<compile_context>
chip_gen: v7x
topology: tpu7x:2x2x1
jax: 0.10.0
libtpu: 0.0.40
codegen_flags: <defaults>
</compile_context>

<pallas_src>
import jax
import jax.numpy as jnp
from jax.experimental import pallas as pl
from jax.experimental.pallas import tpu as pltpu

INPUT_SIZE = 3
HIDDEN_SIZE = 64
OUTPUT_SIZE = 1


def lstm_recurrence_kernel(gx_ref, whh_ref, out_ref, h_sc, c_sc):
    """One grid step = one chunk of Tc timesteps.

    gx_ref:  (Tc, B, 4H) precomputed x_t @ W_ih^T + (b_ih+b_hh), gate columns
             reordered to [i, f, o, g] and the three sigmoid-gate columns
             pre-scaled by 0.5 (so sigmoid = 0.5*tanh(.)+0.5).
    whh_ref: (H, 4H)     hidden->gates weights (transposed, reordered,
             sigmoid columns pre-scaled by 0.5).
    out_ref: (B, H)      last hidden state (written at the final chunk).
    h_sc/c_sc:(B, H)     VMEM scratch carrying h / c across time chunks.
    """
    chunk = pl.program_id(0)
    n_chunks = pl.num_programs(0)
    H = HIDDEN_SIZE
    Tc = gx_ref.shape[0]

    @pl.when(chunk == 0)
    def _():
        h_sc[...] = jnp.zeros_like(h_sc)
        c_sc[...] = jnp.zeros_like(c_sc)

    def step(t, carry):
        h, c = carry
        # Only the recurrent matmul remains on the serial critical path.
        # W_hh is read from VMEM at the dot site (no loop-carried vreg hoist).
        z = gx_ref[t] + jnp.dot(h, whh_ref[...],
                                preferred_element_type=jnp.float32)
        # One full-width, unmasked tanh covers all four gates (columns were
        # pre-scaled in the wrapper): sigma(x) = 0.5*tanh(0.5*x) + 0.5.
        t_all = jnp.tanh(z)
        i_g = 0.5 * t_all[:, :H] + 0.5
        f_g = 0.5 * t_all[:, H:2 * H] + 0.5
        o_g = 0.5 * t_all[:, 2 * H:3 * H] + 0.5
        g_g = t_all[:, 3 * H:]
        c = f_g * c + i_g * g_g
        h = o_g * jnp.tanh(c)
        return h, c

    h, c = jax.lax.fori_loop(
        0, Tc, step, (h_sc[...], c_sc[...]),
        unroll=True if Tc <= 32 else 8)

    h_sc[...] = h
    c_sc[...] = c

    # Emit the last hidden state; the tiny 64->1 Linear is done by XLA outside.
    @pl.when(chunk == n_chunks - 1)
    def _():
        out_ref[...] = h


def lstm_model_forward(x, params, time_chunk=None):
    """x: (B, T, I) float32, batch_first like the PyTorch module."""
    B, T, I = x.shape
    H = HIDDEN_SIZE

    # Reorder gates [i, f, g, o] -> [i, f, o, g] (sigmoid gates contiguous).
    perm = jnp.concatenate([jnp.arange(0, 2 * H),
                            jnp.arange(3 * H, 4 * H),
                            jnp.arange(2 * H, 3 * H)])
    w_ih = params["w_ih"][perm]                       # (4H, I)
    w_hh = params["w_hh"][perm]                       # (4H, H)
    bias = (params["b_ih"] + params["b_hh"])[perm]    # (4H,)

    # Pre-scale the three sigmoid-gate columns by 0.5 so the kernel can use a
    # single full-width tanh per step: sigmoid(x) = 0.5*tanh(0.5*x) + 0.5.
    gate_scale = jnp.concatenate([jnp.full((3 * H,), 0.5, jnp.float32),
                                  jnp.ones((H,), jnp.float32)])

    # Hoist the input projection out of the serial recurrence: one matmul over
    # all timesteps (time-major so each chunk is a contiguous slab).
    x_tbi = jnp.transpose(x, (1, 0, 2)).astype(jnp.float32)      # (T, B, I)
    gates_x = (jnp.dot(x_tbi, w_ih.T,
                       preferred_element_type=jnp.float32)
               + bias) * gate_scale                               # (T, B, 4H)

    whh_t = jnp.transpose(w_hh) * gate_scale          # (H, 4H)

    # Time chunking: one chunk for small T; for long sequences pass a divisor
    # time_chunk (keeps each DMA large & lane-dense, double-buffered by Pallas).
    Tc = T if time_chunk is None else time_chunk
    assert T % Tc == 0, "time_chunk must divide T"
    n_chunks = T // Tc

    h_last = pl.pallas_call(
        lstm_recurrence_kernel,
        out_shape=jax.ShapeDtypeStruct((B, H), jnp.float32),
        grid_spec=pltpu.PrefetchScalarGridSpec(
            num_scalar_prefetch=0,
            grid=(n_chunks,),
            in_specs=[
                pl.BlockSpec((Tc, B, 4 * H), lambda c: (c, 0, 0)),   # gates_x chunk
                pl.BlockSpec((H, 4 * H), lambda c: (0, 0)),          # W_hh^T
            ],
            out_specs=pl.BlockSpec((B, H), lambda c: (0, 0)),
            scratch_shapes=[
                pltpu.VMEM((B, H), jnp.float32),   # h state (carried across chunks)
                pltpu.VMEM((B, H), jnp.float32),   # c state
            ],
        ),
        compiler_params=pltpu.CompilerParams(
            dimension_semantics=("arbitrary",)),   # time chunks carry state
    )(gates_x, whh_t)

    # Final Linear (H -> 1): trivial GEMV, left to XLA (denser kernel output,
    # two fewer block DMAs, no lane-width-1 masked store in the kernel).
    return h_last @ params["w_lin"].T + params["b_lin"]


def reference_forward(x, params):
    """Pure-JAX reference matching PyTorch nn.LSTM + Linear semantics."""
    B, T, I = x.shape
    H = HIDDEN_SIZE
    b = params["b_ih"] + params["b_hh"]
    wih, whh = params["w_ih"], params["w_hh"]

    def step(carry, x_t):
        h, c = carry
        z = x_t @ wih.T + h @ whh.T + b
        i_g = jax.nn.sigmoid(z[:, :H])
        f_g = jax.nn.sigmoid(z[:, H:2 * H])
        g_g = jnp.tanh(z[:, 2 * H:3 * H])
        o_g = jax.nn.sigmoid(z[:, 3 * H:])
        c = f_g * c + i_g * g_g
        h = o_g * jnp.tanh(c)
        return (h, c), None

    h0 = jnp.zeros((B, H), jnp.float32)
    c0 = jnp.zeros((B, H), jnp.float32)
    (h_last, _), _ = jax.lax.scan(step, (h0, c0), jnp.transpose(x, (1, 0, 2)))
    return h_last @ params["w_lin"].T + params["b_lin"]


def init_params(key):
    """Deterministic init mimicking PyTorch's uniform(-1/sqrt(H), 1/sqrt(H))."""
    H, I, O = HIDDEN_SIZE, INPUT_SIZE, OUTPUT_SIZE
    k_lstm = 1.0 / jnp.sqrt(jnp.float32(H))
    k_lin = 1.0 / jnp.sqrt(jnp.float32(H))
    keys = jax.random.split(key, 6)
    u = lambda k, shape, s: jax.random.uniform(k, shape, jnp.float32, -s, s)
    return {
        "w_ih": u(keys[0], (4 * H, I), k_lstm),
        "w_hh": u(keys[1], (4 * H, H), k_lstm),
        "b_ih": u(keys[2], (4 * H,), k_lstm),
        "b_hh": u(keys[3], (4 * H,), k_lstm),
        "w_lin": u(keys[4], (O, H), k_lin),
        "b_lin": u(keys[5], (O,), k_lin),
    }


if __name__ == "__main__":
    key = jax.random.PRNGKey(0)
    k_param, k_x = jax.random.split(key)

    B, T = 2, 8
    params = init_params(k_param)
    x = jax.random.normal(k_x, (B, T, INPUT_SIZE), jnp.float32)

    ref = reference_forward(x, params)

    # Single time chunk (T=8): one grid step, fully unrolled in-kernel loop.
    out = jax.block_until_ready(lstm_model_forward(x, params))
    assert out.shape == (B, OUTPUT_SIZE)
    assert jnp.allclose(out, ref, atol=1e-5, rtol=1e-5), (out, ref)

    # Also exercise the multi-chunk path (state carried across grid steps).
    out_chunked = jax.block_until_ready(
        lstm_model_forward(x, params, time_chunk=4))
    assert jnp.allclose(out_chunked, ref, atol=1e-5, rtol=1e-5), (out_chunked, ref)

    print("KERNEL_OK")
</pallas_src>

<mosaic_0001>
module attributes {stable_mosaic.version = 11 : i64} {
  func.func @lstm_recurrence_kernel(%arg0: i32, %arg1: memref<8x2x256xf32, #tpu.memory_space<vmem>>, %arg2: memref<64x256xf32, #tpu.memory_space<vmem>>, %arg3: memref<2x64xf32, #tpu.memory_space<vmem>>, %arg4: memref<2x64xf32, #tpu.memory_space<vmem>>, %arg5: memref<2x64xf32, #tpu.memory_space<vmem>>) attributes {dimension_semantics = [#tpu.dimension_semantics<arbitrary>], iteration_bounds = array<i64: 1>, scalar_prefetch = 0 : i64, scratch_operands = 2 : i64, tpu.core_type = #tpu.core_type<tc>, window_params = [{transform_indices = @transform_0, window_bounds = array<i64: 8, 2, 256>}, {pipeline_mode = #tpu.pipeline_mode<synchronous>, transform_indices = @transform_1, window_bounds = array<i64: 64, 256>}, {pipeline_mode = #tpu.pipeline_mode<synchronous>, transform_indices = @transform_2, window_bounds = array<i64: 2, 64>}]} {
    %c0_i32 = arith.constant 0 : i32
    %0 = arith.cmpi eq, %arg0, %c0_i32 : i32
    %1 = arith.extui %0 : i1 to i32
    %c0_i32_0 = arith.constant 0 : i32
    %2 = arith.cmpi ne, %1, %c0_i32_0 : i32
    scf.if %2 {
      %cst_98 = arith.constant 0.000000e+00 : f32
      %234 = vector.broadcast %cst_98 : f32 to vector<2x64xf32>
      %c0_99 = arith.constant 0 : index
      %c0_100 = arith.constant 0 : index
      %235 = vector.load %arg4[%c0_99, %c0_100] : memref<2x64xf32, #tpu.memory_space<vmem>>, vector<2x64xf32>
      tpu.vector_store %arg4[%c0_99, %c0_100], %234 {strides = array<i32>} : memref<2x64xf32, #tpu.memory_space<vmem>>, vector<2x64xf32>,
      %cst_101 = arith.constant 0.000000e+00 : f32
      %236 = vector.broadcast %cst_101 : f32 to vector<2x64xf32>
      %c0_102 = arith.constant 0 : index
      %c0_103 = arith.constant 0 : index
      %237 = vector.load %arg5[%c0_102, %c0_103] : memref<2x64xf32, #tpu.memory_space<vmem>>, vector<2x64xf32>
      tpu.vector_store %arg5[%c0_102, %c0_103], %236 {strides = array<i32>} : memref<2x64xf32, #tpu.memory_space<vmem>>, vector<2x64xf32>,
    } else {
    }
    %c0 = arith.constant 0 : index
    %c0_1 = arith.constant 0 : index
    %3 = vector.load %arg4[%c0, %c0_1] : memref<2x64xf32, #tpu.memory_space<vmem>>, vector<2x64xf32>
    %c0_2 = arith.constant 0 : index
    %c0_3 = arith.constant 0 : index
    %4 = vector.load %arg5[%c0_2, %c0_3] : memref<2x64xf32, #tpu.memory_space<vmem>>, vector<2x64xf32>
    %c0_i32_4 = arith.constant 0 : i32
    %5 = arith.index_cast %c0_i32_4 : i32 to index
    %c0_5 = arith.constant 0 : index
    %c0_6 = arith.constant 0 : index
    %6 = vector.load %arg1[%5, %c0_5, %c0_6] : memref<8x2x256xf32, #tpu.memory_space<vmem>>, vector<1x2x256xf32>
    %7 = vector.shape_cast %6 : vector<1x2x256xf32> to vector<2x256xf32>
    %c0_7 = arith.constant 0 : index
    %c0_8 = arith.constant 0 : index
    %8 = vector.load %arg2[%c0_7, %c0_8] : memref<64x256xf32, #tpu.memory_space<vmem>>, vector<64x256xf32>
    %cst = arith.constant dense<0.000000e+00> : vector<2x256xf32>
    %9 = tpu.matmul %3, %8, %cst {dimension_numbers = #tpu.dot_dimension_numbers<[1], [0], [0], [1], [0, 0, 1, 1], [], []>} : vector<2x64xf32>, vector<64x256xf32>, vector<2x256xf32> -> vector<2x256xf32>
    %10 = arith.addf %7, %9 : vector<2x256xf32>
    %11 = math.tanh %10 : vector<2x256xf32>
    %12 = vector.extract_strided_slice %11 {offsets = [0, 0], sizes = [2, 64], strides = [1, 1]} : vector<2x256xf32> to vector<2x64xf32>
    %cst_9 = arith.constant 5.000000e-01 : f32
    %13 = vector.broadcast %cst_9 : f32 to vector<2x64xf32>
    %14 = arith.mulf %13, %12 : vector<2x64xf32>
    %cst_10 = arith.constant 5.000000e-01 : f32
    %15 = vector.broadcast %cst_10 : f32 to vector<2x64xf32>
    %16 = arith.addf %14, %15 : vector<2x64xf32>
    %17 = vector.extract_strided_slice %11 {offsets = [0, 64], sizes = [2, 64], strides = [1, 1]} : vector<2x256xf32> to vector<2x64xf32>
    %cst_11 = arith.constant 5.000000e-01 : f32
    %18 = vector.broadcast %cst_11 : f32 to vector<2x64xf32>
    %19 = arith.mulf %18, %17 : vector<2x64xf32>
    %cst_12 = arith.constant 5.000000e-01 : f32
    %20 = vector.broadcast %cst_12 : f32 to vector<2x64xf32>
    %21 = arith.addf %19, %20 : vector<2x64xf32>
    %22 = vector.extract_strided_slice %11 {offsets = [0, 128], sizes = [2, 64], strides = [1, 1]} : vector<2x256xf32> to vector<2x64xf32>
    %cst_13 = arith.constant 5.000000e-01 : f32
    %23 = vector.broadcast %cst_13 : f32 to vector<2x64xf32>
    %24 = arith.mulf %23, %22 : vector<2x64xf32>
    %cst_14 = arith.constant 5.000000e-01 : f32
    %25 = vector.broadcast %cst_14 : f32 to vector<2x64xf32>
    %26 = arith.addf %24, %25 : vector<2x64xf32>
    %27 = vector.extract_strided_slice %11 {offsets = [0, 192], sizes = [2, 64], strides = [1, 1]} : vector<2x256xf32> to vector<2x64xf32>
    %28 = arith.mulf %21, %4 : vector<2x64xf32>
    %29 = arith.mulf %16, %27 : vector<2x64xf32>
    %30 = arith.addf %28, %29 : vector<2x64xf32>
    %31 = math.tanh %30 : vector<2x64xf32>
    %32 = arith.mulf %26, %31 : vector<2x64xf32>
    %c1_i32 = arith.constant 1 : i32
    %33 = arith.index_cast %c1_i32 : i32 to index
    %c0_15 = arith.constant 0 : index
    %c0_16 = arith.constant 0 : index
    %34 = vector.load %arg1[%33, %c0_15, %c0_16] : memref<8x2x256xf32, #tpu.memory_space<vmem>>, vector<1x2x256xf32>
    %35 = vector.shape_cast %34 : vector<1x2x256xf32> to vector<2x256xf32>
    %c0_17 = arith.constant 0 : index
    %c0_18 = arith.constant 0 : index
    %36 = vector.load %arg2[%c0_17, %c0_18] : memref<64x256xf32, #tpu.memory_space<vmem>>, vector<64x256xf32>
    %cst_19 = arith.constant dense<0.000000e+00> : vector<2x256xf32>
    %37 = tpu.matmul %32, %36, %cst_19 {dimension_numbers = #tpu.dot_dimension_numbers<[1], [0], [0], [1], [0, 0, 1, 1], [], []>} : vector<2x64xf32>, vector<64x256xf32>, vector<2x256xf32> -> vector<2x256xf32>
    %38 = arith.addf %35, %37 : vector<2x256xf32>
    %39 = math.tanh %38 : vector<2x256xf32>
    %40 = vector.extract_strided_slice %39 {offsets = [0, 0], sizes = [2, 64], strides = [1, 1]} : vector<2x256xf32> to vector<2x64xf32>
    %cst_20 = arith.constant 5.000000e-01 : f32
    %41 = vector.broadcast %cst_20 : f32 to vector<2x64xf32>
    %42 = arith.mulf %41, %40 : vector<2x64xf32>
    %cst_21 = arith.constant 5.000000e-01 : f32
    %43 = vector.broadcast %cst_21 : f32 to vector<2x64xf32>
    %44 = arith.addf %42, %43 : vector<2x64xf32>
    %45 = vector.extract_strided_slice %39 {offsets = [0, 64], sizes = [2, 64], strides = [1, 1]} : vector<2x256xf32> to vector<2x64xf32>
    %cst_22 = arith.constant 5.000000e-01 : f32
    %46 = vector.broadcast %cst_22 : f32 to vector<2x64xf32>
    %47 = arith.mulf %46, %45 : vector<2x64xf32>
    %cst_23 = arith.constant 5.000000e-01 : f32
    %48 = vector.broadcast %cst_23 : f32 to vector<2x64xf32>
    %49 = arith.addf %47, %48 : vector<2x64xf32>
    %50 = vector.extract_strided_slice %39 {offsets = [0, 128], sizes = [2, 64], strides = [1, 1]} : vector<2x256xf32> to vector<2x64xf32>
    %cst_24 = arith.constant 5.000000e-01 : f32
    %51 = vector.broadcast %cst_24 : f32 to vector<2x64xf32>
    %52 = arith.mulf %51, %50 : vector<2x64xf32>
    %cst_25 = arith.constant 5.000000e-01 : f32
    %53 = vector.broadcast %cst_25 : f32 to vector<2x64xf32>
    %54 = arith.addf %52, %53 : vector<2x64xf32>
    %55 = vector.extract_strided_slice %39 {offsets = [0, 192], sizes = [2, 64], strides = [1, 1]} : vector<2x256xf32> to vector<2x64xf32>
    %56 = arith.mulf %49, %30 : vector<2x64xf32>
    %57 = arith.mulf %44, %55 : vector<2x64xf32>
    %58 = arith.addf %56, %57 : vector<2x64xf32>
    %59 = math.tanh %58 : vector<2x64xf32>
    %60 = arith.mulf %54, %59 : vector<2x64xf32>
    %c2_i32 = arith.constant 2 : i32
    %61 = arith.index_cast %c2_i32 : i32 to index
    %c0_26 = arith.constant 0 : index
    %c0_27 = arith.constant 0 : index
    %62 = vector.load %arg1[%61, %c0_26, %c0_27] : memref<8x2x256xf32, #tpu.memory_space<vmem>>, vector<1x2x256xf32>
    %63 = vector.shape_cast %62 : vector<1x2x256xf32> to vector<2x256xf32>
    %c0_28 = arith.constant 0 : index
    %c0_29 = arith.constant 0 : index
    %64 = vector.load %arg2[%c0_28, %c0_29] : memref<64x256xf32, #tpu.memory_space<vmem>>, vector<64x256xf32>
    %cst_30 = arith.constant dense<0.000000e+00> : vector<2x256xf32>
    %65 = tpu.matmul %60, %64, %cst_30 {dimension_numbers = #tpu.dot_dimension_numbers<[1], [0], [0], [1], [0, 0, 1, 1], [], []>} : vector<2x64xf32>, vector<64x256xf32>, vector<2x256xf32> -> vector<2x256xf32>
    %66 = arith.addf %63, %65 : vector<2x256xf32>
    %67 = math.tanh %66 : vector<2x256xf32>
    %68 = vector.extract_strided_slice %67 {offsets = [0, 0], sizes = [2, 64], strides = [1, 1]} : vector<2x256xf32> to vector<2x64xf32>
    %cst_31 = arith.constant 5.000000e-01 : f32
    %69 = vector.broadcast %cst_31 : f32 to vector<2x64xf32>
    %70 = arith.mulf %69, %68 : vector<2x64xf32>
    %cst_32 = arith.constant 5.000000e-01 : f32
    %71 = vector.broadcast %cst_32 : f32 to vector<2x64xf32>
    %72 = arith.addf %70, %71 : vector<2x64xf32>
    %73 = vector.extract_strided_slice %67 {offsets = [0, 64], sizes = [2, 64], strides = [1, 1]} : vector<2x256xf32> to vector<2x64xf32>
    %cst_33 = arith.constant 5.000000e-01 : f32
    %74 = vector.broadcast %cst_33 : f32 to vector<2x64xf32>
    %75 = arith.mulf %74, %73 : vector<2x64xf32>
    %cst_34 = arith.constant 5.000000e-01 : f32
    %76 = vector.broadcast %cst_34 : f32 to vector<2x64xf32>
    %77 = arith.addf %75, %76 : vector<2x64xf32>
    %78 = vector.extract_strided_slice %67 {offsets = [0, 128], sizes = [2, 64], strides = [1, 1]} : vector<2x256xf32> to vector<2x64xf32>
    %cst_35 = arith.constant 5.000000e-01 : f32
    %79 = vector.broadcast %cst_35 : f32 to vector<2x64xf32>
    %80 = arith.mulf %79, %78 : vector<2x64xf32>
    %cst_36 = arith.constant 5.000000e-01 : f32
    %81 = vector.broadcast %cst_36 : f32 to vector<2x64xf32>
    %82 = arith.addf %80, %81 : vector<2x64xf32>
    %83 = vector.extract_strided_slice %67 {offsets = [0, 192], sizes = [2, 64], strides = [1, 1]} : vector<2x256xf32> to vector<2x64xf32>
    %84 = arith.mulf %77, %58 : vector<2x64xf32>
    %85 = arith.mulf %72, %83 : vector<2x64xf32>
    %86 = arith.addf %84, %85 : vector<2x64xf32>
    %87 = math.tanh %86 : vector<2x64xf32>
    %88 = arith.mulf %82, %87 : vector<2x64xf32>
    %c3_i32 = arith.constant 3 : i32
    %89 = arith.index_cast %c3_i32 : i32 to index
    %c0_37 = arith.constant 0 : index
    %c0_38 = arith.constant 0 : index
    %90 = vector.load %arg1[%89, %c0_37, %c0_38] : memref<8x2x256xf32, #tpu.memory_space<vmem>>, vector<1x2x256xf32>
    %91 = vector.shape_cast %90 : vector<1x2x256xf32> to vector<2x256xf32>
    %c0_39 = arith.constant 0 : index
    %c0_40 = arith.constant 0 : index
    %92 = vector.load %arg2[%c0_39, %c0_40] : memref<64x256xf32, #tpu.memory_space<vmem>>, vector<64x256xf32>
    %cst_41 = arith.constant dense<0.000000e+00> : vector<2x256xf32>
    %93 = tpu.matmul %88, %92, %cst_41 {dimension_numbers = #tpu.dot_dimension_numbers<[1], [0], [0], [1], [0, 0, 1, 1], [], []>} : vector<2x64xf32>, vector<64x256xf32>, vector<2x256xf32> -> vector<2x256xf32>
    %94 = arith.addf %91, %93 : vector<2x256xf32>
    %95 = math.tanh %94 : vector<2x256xf32>
    %96 = vector.extract_strided_slice %95 {offsets = [0, 0], sizes = [2, 64], strides = [1, 1]} : vector<2x256xf32> to vector<2x64xf32>
    %cst_42 = arith.constant 5.000000e-01 : f32
    %97 = vector.broadcast %cst_42 : f32 to vector<2x64xf32>
    %98 = arith.mulf %97, %96 : vector<2x64xf32>
    %cst_43 = arith.constant 5.000000e-01 : f32
    %99 = vector.broadcast %cst_43 : f32 to vector<2x64xf32>
    %100 = arith.addf %98, %99 : vector<2x64xf32>
    %101 = vector.extract_strided_slice %95 {offsets = [0, 64], sizes = [2, 64], strides = [1, 1]} : vector<2x256xf32> to vector<2x64xf32>
    %cst_44 = arith.constant 5.000000e-01 : f32
    %102 = vector.broadcast %cst_44 : f32 to vector<2x64xf32>
    %103 = arith.mulf %102, %101 : vector<2x64xf32>
    %cst_45 = arith.constant 5.000000e-01 : f32
    %104 = vector.broadcast %cst_45 : f32 to vector<2x64xf32>
    %105 = arith.addf %103, %104 : vector<2x64xf32>
    %106 = vector.extract_strided_slice %95 {offsets = [0, 128], sizes = [2, 64], strides = [1, 1]} : vector<2x256xf32> to vector<2x64xf32>
    %cst_46 = arith.constant 5.000000e-01 : f32
    %107 = vector.broadcast %cst_46 : f32 to vector<2x64xf32>
    %108 = arith.mulf %107, %106 : vector<2x64xf32>
    %cst_47 = arith.constant 5.000000e-01 : f32
    %109 = vector.broadcast %cst_47 : f32 to vector<2x64xf32>
    %110 = arith.addf %108, %109 : vector<2x64xf32>
    %111 = vector.extract_strided_slice %95 {offsets = [0, 192], sizes = [2, 64], strides = [1, 1]} : vector<2x256xf32> to vector<2x64xf32>
    %112 = arith.mulf %105, %86 : vector<2x64xf32>
    %113 = arith.mulf %100, %111 : vector<2x64xf32>
    %114 = arith.addf %112, %113 : vector<2x64xf32>
    %115 = math.tanh %114 : vector<2x64xf32>
    %116 = arith.mulf %110, %115 : vector<2x64xf32>
    %c4_i32 = arith.constant 4 : i32
    %117 = arith.index_cast %c4_i32 : i32 to index
    %c0_48 = arith.constant 0 : index
    %c0_49 = arith.constant 0 : index
    %118 = vector.load %arg1[%117, %c0_48, %c0_49] : memref<8x2x256xf32, #tpu.memory_space<vmem>>, vector<1x2x256xf32>
    %119 = vector.shape_cast %118 : vector<1x2x256xf32> to vector<2x256xf32>
    %c0_50 = arith.constant 0 : index
    %c0_51 = arith.constant 0 : index
    %120 = vector.load %arg2[%c0_50, %c0_51] : memref<64x256xf32, #tpu.memory_space<vmem>>, vector<64x256xf32>
    %cst_52 = arith.constant dense<0.000000e+00> : vector<2x256xf32>
    %121 = tpu.matmul %116, %120, %cst_52 {dimension_numbers = #tpu.dot_dimension_numbers<[1], [0], [0], [1], [0, 0, 1, 1], [], []>} : vector<2x64xf32>, vector<64x256xf32>, vector<2x256xf32> -> vector<2x256xf32>
    %122 = arith.addf %119, %121 : vector<2x256xf32>
    %123 = math.tanh %122 : vector<2x256xf32>
    %124 = vector.extract_strided_slice %123 {offsets = [0, 0], sizes = [2, 64], strides = [1, 1]} : vector<2x256xf32> to vector<2x64xf32>
    %cst_53 = arith.constant 5.000000e-01 : f32
    %125 = vector.broadcast %cst_53 : f32 to vector<2x64xf32>
    %126 = arith.mulf %125, %124 : vector<2x64xf32>
    %cst_54 = arith.constant 5.000000e-01 : f32
    %127 = vector.broadcast %cst_54 : f32 to vector<2x64xf32>
    %128 = arith.addf %126, %127 : vector<2x64xf32>
    %129 = vector.extract_strided_slice %123 {offsets = [0, 64], sizes = [2, 64], strides = [1, 1]} : vector<2x256xf32> to vector<2x64xf32>
    %cst_55 = arith.constant 5.000000e-01 : f32
    %130 = vector.broadcast %cst_55 : f32 to vector<2x64xf32>
    %131 = arith.mulf %130, %129 : vector<2x64xf32>
    %cst_56 = arith.constant 5.000000e-01 : f32
    %132 = vector.broadcast %cst_56 : f32 to vector<2x64xf32>
    %133 = arith.addf %131, %132 : vector<2x64xf32>
    %134 = vector.extract_strided_slice %123 {offsets = [0, 128], sizes = [2, 64], strides = [1, 1]} : vector<2x256xf32> to vector<2x64xf32>
    %cst_57 = arith.constant 5.000000e-01 : f32
    %135 = vector.broadcast %cst_57 : f32 to vector<2x64xf32>
    %136 = arith.mulf %135, %134 : vector<2x64xf32>
    %cst_58 = arith.constant 5.000000e-01 : f32
    %137 = vector.broadcast %cst_58 : f32 to vector<2x64xf32>
    %138 = arith.addf %136, %137 : vector<2x64xf32>
    %139 = vector.extract_strided_slice %123 {offsets = [0, 192], sizes = [2, 64], strides = [1, 1]} : vector<2x256xf32> to vector<2x64xf32>
    %140 = arith.mulf %133, %114 : vector<2x64xf32>
    %141 = arith.mulf %128, %139 : vector<2x64xf32>
    %142 = arith.addf %140, %141 : vector<2x64xf32>
    %143 = math.tanh %142 : vector<2x64xf32>
    %144 = arith.mulf %138, %143 : vector<2x64xf32>
    %c5_i32 = arith.constant 5 : i32
    %145 = arith.index_cast %c5_i32 : i32 to index
    %c0_59 = arith.constant 0 : index
    %c0_60 = arith.constant 0 : index
    %146 = vector.load %arg1[%145, %c0_59, %c0_60] : memref<8x2x256xf32, #tpu.memory_space<vmem>>, vector<1x2x256xf32>
    %147 = vector.shape_cast %146 : vector<1x2x256xf32> to vector<2x256xf32>
    %c0_61 = arith.constant 0 : index
    %c0_62 = arith.constant 0 : index
    %148 = vector.load %arg2[%c0_61, %c0_62] : memref<64x256xf32, #tpu.memory_space<vmem>>, vector<64x256xf32>
    %cst_63 = arith.constant dense<0.000000e+00> : vector<2x256xf32>
    %149 = tpu.matmul %144, %148, %cst_63 {dimension_numbers = #tpu.dot_dimension_numbers<[1], [0], [0], [1], [0, 0, 1, 1], [], []>} : vector<2x64xf32>, vector<64x256xf32>, vector<2x256xf32> -> vector<2x256xf32>
    %150 = arith.addf %147, %149 : vector<2x256xf32>
    %151 = math.tanh %150 : vector<2x256xf32>
    %152 = vector.extract_strided_slice %151 {offsets = [0, 0], sizes = [2, 64], strides = [1, 1]} : vector<2x256xf32> to vector<2x64xf32>
    %cst_64 = arith.constant 5.000000e-01 : f32
    %153 = vector.broadcast %cst_64 : f32 to vector<2x64xf32>
    %154 = arith.mulf %153, %152 : vector<2x64xf32>
    %cst_65 = arith.constant 5.000000e-01 : f32
    %155 = vector.broadcast %cst_65 : f32 to vector<2x64xf32>
    %156 = arith.addf %154, %155 : vector<2x64xf32>
    %157 = vector.extract_strided_slice %151 {offsets = [0, 64], sizes = [2, 64], strides = [1, 1]} : vector<2x256xf32> to vector<2x64xf32>
    %cst_66 = arith.constant 5.000000e-01 : f32
    %158 = vector.broadcast %cst_66 : f32 to vector<2x64xf32>
    %159 = arith.mulf %158, %157 : vector<2x64xf32>
    %cst_67 = arith.constant 5.000000e-01 : f32
    %160 = vector.broadcast %cst_67 : f32 to vector<2x64xf32>
    %161 = arith.addf %159, %160 : vector<2x64xf32>
    %162 = vector.extract_strided_slice %151 {offsets = [0, 128], sizes = [2, 64], strides = [1, 1]} : vector<2x256xf32> to vector<2x64xf32>
    %cst_68 = arith.constant 5.000000e-01 : f32
    %163 = vector.broadcast %cst_68 : f32 to vector<2x64xf32>
    %164 = arith.mulf %163, %162 : vector<2x64xf32>
    %cst_69 = arith.constant 5.000000e-01 : f32
    %165 = vector.broadcast %cst_69 : f32 to vector<2x64xf32>
    %166 = arith.addf %164, %165 : vector<2x64xf32>
    %167 = vector.extract_strided_slice %151 {offsets = [0, 192], sizes = [2, 64], strides = [1, 1]} : vector<2x256xf32> to vector<2x64xf32>
    %168 = arith.mulf %161, %142 : vector<2x64xf32>
    %169 = arith.mulf %156, %167 : vector<2x64xf32>
    %170 = arith.addf %168, %169 : vector<2x64xf32>
    %171 = math.tanh %170 : vector<2x64xf32>
    %172 = arith.mulf %166, %171 : vector<2x64xf32>
    %c6_i32 = arith.constant 6 : i32
    %173 = arith.index_cast %c6_i32 : i32 to index
    %c0_70 = arith.constant 0 : index
    %c0_71 = arith.constant 0 : index
    %174 = vector.load %arg1[%173, %c0_70, %c0_71] : memref<8x2x256xf32, #tpu.memory_space<vmem>>, vector<1x2x256xf32>
    %175 = vector.shape_cast %174 : vector<1x2x256xf32> to vector<2x256xf32>
    %c0_72 = arith.constant 0 : index
    %c0_73 = arith.constant 0 : index
    %176 = vector.load %arg2[%c0_72, %c0_73] : memref<64x256xf32, #tpu.memory_space<vmem>>, vector<64x256xf32>
    %cst_74 = arith.constant dense<0.000000e+00> : vector<2x256xf32>
    %177 = tpu.matmul %172, %176, %cst_74 {dimension_numbers = #tpu.dot_dimension_numbers<[1], [0], [0], [1], [0, 0, 1, 1], [], []>} : vector<2x64xf32>, vector<64x256xf32>, vector<2x256xf32> -> vector<2x256xf32>
    %178 = arith.addf %175, %177 : vector<2x256xf32>
    %179 = math.tanh %178 : vector<2x256xf32>
    %180 = vector.extract_strided_slice %179 {offsets = [0, 0], sizes = [2, 64], strides = [1, 1]} : vector<2x256xf32> to vector<2x64xf32>
    %cst_75 = arith.constant 5.000000e-01 : f32
    %181 = vector.broadcast %cst_75 : f32 to vector<2x64xf32>
    %182 = arith.mulf %181, %180 : vector<2x64xf32>
    %cst_76 = arith.constant 5.000000e-01 : f32
    %183 = vector.broadcast %cst_76 : f32 to vector<2x64xf32>
    %184 = arith.addf %182, %183 : vector<2x64xf32>
    %185 = vector.extract_strided_slice %179 {offsets = [0, 64], sizes = [2, 64], strides = [1, 1]} : vector<2x256xf32> to vector<2x64xf32>
    %cst_77 = arith.constant 5.000000e-01 : f32
    %186 = vector.broadcast %cst_77 : f32 to vector<2x64xf32>
    %187 = arith.mulf %186, %185 : vector<2x64xf32>
    %cst_78 = arith.constant 5.000000e-01 : f32
    %188 = vector.broadcast %cst_78 : f32 to vector<2x64xf32>
    %189 = arith.addf %187, %188 : vector<2x64xf32>
    %190 = vector.extract_strided_slice %179 {offsets = [0, 128], sizes = [2, 64], strides = [1, 1]} : vector<2x256xf32> to vector<2x64xf32>
    %cst_79 = arith.constant 5.000000e-01 : f32
    %191 = vector.broadcast %cst_79 : f32 to vector<2x64xf32>
    %192 = arith.mulf %191, %190 : vector<2x64xf32>
    %cst_80 = arith.constant 5.000000e-01 : f32
    %193 = vector.broadcast %cst_80 : f32 to vector<2x64xf32>
    %194 = arith.addf %192, %193 : vector<2x64xf32>
    %195 = vector.extract_strided_slice %179 {offsets = [0, 192], sizes = [2, 64], strides = [1, 1]} : vector<2x256xf32> to vector<2x64xf32>
    %196 = arith.mulf %189, %170 : vector<2x64xf32>
    %197 = arith.mulf %184, %195 : vector<2x64xf32>
    %198 = arith.addf %196, %197 : vector<2x64xf32>
    %199 = math.tanh %198 : vector<2x64xf32>
    %200 = arith.mulf %194, %199 : vector<2x64xf32>
    %c7_i32 = arith.constant 7 : i32
    %201 = arith.index_cast %c7_i32 : i32 to index
    %c0_81 = arith.constant 0 : index
    %c0_82 = arith.constant 0 : index
    %202 = vector.load %arg1[%201, %c0_81, %c0_82] : memref<8x2x256xf32, #tpu.memory_space<vmem>>, vector<1x2x256xf32>
    %203 = vector.shape_cast %202 : vector<1x2x256xf32> to vector<2x256xf32>
    %c0_83 = arith.constant 0 : index
    %c0_84 = arith.constant 0 : index
    %204 = vector.load %arg2[%c0_83, %c0_84] : memref<64x256xf32, #tpu.memory_space<vmem>>, vector<64x256xf32>
    %cst_85 = arith.constant dense<0.000000e+00> : vector<2x256xf32>
    %205 = tpu.matmul %200, %204, %cst_85 {dimension_numbers = #tpu.dot_dimension_numbers<[1], [0], [0], [1], [0, 0, 1, 1], [], []>} : vector<2x64xf32>, vector<64x256xf32>, vector<2x256xf32> -> vector<2x256xf32>
    %206 = arith.addf %203, %205 : vector<2x256xf32>
    %207 = math.tanh %206 : vector<2x256xf32>
    %208 = vector.extract_strided_slice %207 {offsets = [0, 0], sizes = [2, 64], strides = [1, 1]} : vector<2x256xf32> to vector<2x64xf32>
    %cst_86 = arith.constant 5.000000e-01 : f32
    %209 = vector.broadcast %cst_86 : f32 to vector<2x64xf32>
    %210 = arith.mulf %209, %208 : vector<2x64xf32>
    %cst_87 = arith.constant 5.000000e-01 : f32
    %211 = vector.broadcast %cst_87 : f32 to vector<2x64xf32>
    %212 = arith.addf %210, %211 : vector<2x64xf32>
    %213 = vector.extract_strided_slice %207 {offsets = [0, 64], sizes = [2, 64], strides = [1, 1]} : vector<2x256xf32> to vector<2x64xf32>
    %cst_88 = arith.constant 5.000000e-01 : f32
    %214 = vector.broadcast %cst_88 : f32 to vector<2x64xf32>
    %215 = arith.mulf %214, %213 : vector<2x64xf32>
    %cst_89 = arith.constant 5.000000e-01 : f32
    %216 = vector.broadcast %cst_89 : f32 to vector<2x64xf32>
    %217 = arith.addf %215, %216 : vector<2x64xf32>
    %218 = vector.extract_strided_slice %207 {offsets = [0, 128], sizes = [2, 64], strides = [1, 1]} : vector<2x256xf32> to vector<2x64xf32>
    %cst_90 = arith.constant 5.000000e-01 : f32
    %219 = vector.broadcast %cst_90 : f32 to vector<2x64xf32>
    %220 = arith.mulf %219, %218 : vector<2x64xf32>
    %cst_91 = arith.constant 5.000000e-01 : f32
    %221 = vector.broadcast %cst_91 : f32 to vector<2x64xf32>
    %222 = arith.addf %220, %221 : vector<2x64xf32>
    %223 = vector.extract_strided_slice %207 {offsets = [0, 192], sizes = [2, 64], strides = [1, 1]} : vector<2x256xf32> to vector<2x64xf32>
    %224 = arith.mulf %217, %198 : vector<2x64xf32>
    %225 = arith.mulf %212, %223 : vector<2x64xf32>
    %226 = arith.addf %224, %225 : vector<2x64xf32>
    %227 = math.tanh %226 : vector<2x64xf32>
    %228 = arith.mulf %222, %227 : vector<2x64xf32>
    %c8_i32 = arith.constant 8 : i32
    %c0_92 = arith.constant 0 : index
    %c0_93 = arith.constant 0 : index
    %229 = vector.load %arg4[%c0_92, %c0_93] : memref<2x64xf32, #tpu.memory_space<vmem>>, vector<2x64xf32>
    tpu.vector_store %arg4[%c0_92, %c0_93], %228 {strides = array<i32>} : memref<2x64xf32, #tpu.memory_space<vmem>>, vector<2x64xf32>,
    %c0_94 = arith.constant 0 : index
    %c0_95 = arith.constant 0 : index
    %230 = vector.load %arg5[%c0_94, %c0_95] : memref<2x64xf32, #tpu.memory_space<vmem>>, vector<2x64xf32>
    tpu.vector_store %arg5[%c0_94, %c0_95], %226 {strides = array<i32>} : memref<2x64xf32, #tpu.memory_space<vmem>>, vector<2x64xf32>,
    %c0_i32_96 = arith.constant 0 : i32
    %231 = arith.cmpi eq, %arg0, %c0_i32_96 : i32
    %232 = arith.extui %231 : i1 to i32
    %c0_i32_97 = arith.constant 0 : i32
    %233 = arith.cmpi ne, %232, %c0_i32_97 : i32
    scf.if %233 {
      %c0_98 = arith.constant 0 : index
      %c0_99 = arith.constant 0 : index
      %234 = vector.load %arg3[%c0_98, %c0_99] : memref<2x64xf32, #tpu.memory_space<vmem>>, vector<2x64xf32>
      tpu.vector_store %arg3[%c0_98, %c0_99], %228 {strides = array<i32>} : memref<2x64xf32, #tpu.memory_space<vmem>>, vector<2x64xf32>,
    } else {
    }
    return
  }
  func.func @transform_0(%arg0: i32) -> (i32, i32, i32) {
    %c0_i32 = arith.constant 0 : i32
    %c0_i32_0 = arith.constant 0 : i32
    %c0_i32_1 = arith.constant 0 : i32
    return %arg0, %c0_i32, %c0_i32_0 : i32, i32, i32
  }
  func.func @transform_1(%arg0: i32) -> (i32, i32) {
    %c0_i32 = arith.constant 0 : i32
    %c0_i32_0 = arith.constant 0 : i32
    %c0_i32_1 = arith.constant 0 : i32
    return %c0_i32, %c0_i32_0 : i32, i32
  }
  func.func @transform_2(%arg0: i32) -> (i32, i32) {
    %c0_i32 = arith.constant 0 : i32
    %c0_i32_0 = arith.constant 0 : i32
    %c0_i32_1 = arith.constant 0 : i32
    return %c0_i32, %c0_i32_0 : i32, i32
  }
}

</mosaic_0001>

<llo_original>
// kernel: tpu_custom_call.1
$region0: #{tpu_custom_call.1}
  #allocation0 [shape = 'u32[]', space=smem, size = 0x4, offset = 0x4, fixed_abs, tag = 'smem constant byte address 0x4 - core index']
  #allocation1 [shape = 'u32[144,128]{1,0:T(1,128)}', space=vmem, size = 0x12000, scoped, tag = 'internal scratch']
  #allocation2 [shape = 'f32[2,64]{1,0:T(2,128)}', space=vmem, size = 0x400, scoped, tag = 'scratch operand']
  #allocation3 [shape = 'f32[2,64]{1,0:T(2,128)}', space=vmem, size = 0x400, scoped, tag = 'scratch operand']
  %s0 = inlined_call_operand.hbm [shape: f32[8,2,256], index: 0, kind: input, shape index: {}]
  %s1 = inlined_call_operand.hbm [shape: f32[64,256], index: 1, kind: input, shape index: {}]
  %s2 = inlined_call_operand.hbm [shape: f32[2,64], index: 2, kind: output, shape index: {}]
  %s3 = sld [smem:[#allocation0]]
  $region34: #{tpu_custom_call.1} parent=0
    _
  %s5 = ssub.s32 1, %s3
  %s6 = scalar_select 0, %s5, %s3
  $region1: #{tpu_custom_call.1} parent=0
    #allocation4 [shape = 'u8[16384]{0}', space=vmem, size = 0x4000, scoped, tag = 'input window, operand 0, single buffered']
    #allocation5 [shape = 's32[1]{0}', space=sflag, size = 0x4, scoped, tag = 'scoped memory for tpu_custom_call.1']
    #allocation6 [shape = 's32[1]{0}', space=sflag, size = 0x4, scoped, tag = 'scoped memory for tpu_custom_call.1']
    #allocation7 [shape = 'u8[65536]{0}', space=vmem, size = 0x10000, scoped, tag = 'input window, operand 1, single buffered']
    #allocation8 [shape = 's32[1]{0}', space=sflag, size = 0x4, scoped, tag = 'scoped memory for tpu_custom_call.1']
    #allocation9 [shape = 'u8[1024]{0}', space=vmem, size = 0x400, scoped, tag = 'output window, operand 0, single buffered']
    %7 = vsyncpa [#allocation5], 0
    %8 = vsyncpa [#allocation8], 0
    %9 = vsyncpa [#allocation6], 0
    // Predicated region
    $region2: #{tpu_custom_call.1} parent=1 // pred_check
      _
    $region3: #{tpu_custom_call.1} parent=1 // pred_check_branch
      %11 = sbr.rel (0) target = $region5
    $region4: #{tpu_custom_call.1} parent=1 // pred_region
      %s13 = ssub.s32 512, 512
      %14 = vsyncadd [#allocation5], %s13
      %s15 = sshll.u32 [#allocation4], 4
      %s16 = int_to_ptr.vmem [resolvable:$true] %s15
      %21 = dma.hbm_to_vmem [thread:$0]  %s0, 512, %s16, [#allocation5], 64, 64, 4
    $region5: #{tpu_custom_call.1} parent=1 // pred_fallthru
      _
    // Predicated region
    $region6: #{tpu_custom_call.1} parent=1 // pred_check
      _
    $region7: #{tpu_custom_call.1} parent=1 // pred_check_branch
      %23 = sbr.rel (0) target = $region9
    $region8: #{tpu_custom_call.1} parent=1 // pred_region
      %s25 = ssub.s32 2048, 2048
      %26 = vsyncadd [#allocation8], %s25
      %s27 = sshll.u32 [#allocation7], 4
      %s28 = int_to_ptr.vmem [resolvable:$true] %s27
      %33 = dma.hbm_to_vmem [thread:$0]  %s1, 2048, %s28, [#allocation8], 256, 256, 16
    $region9: #{tpu_custom_call.1} parent=1 // pred_fallthru
      _
    // Predicated region
    $region10: #{tpu_custom_call.1} parent=1 // pred_check
      _
    $region11: #{tpu_custom_call.1} parent=1 // pred_check_branch
      %35 = sbr.rel (0) target = $region13
    $region12: #{tpu_custom_call.1} parent=1 // pred_region
      %36 = dma.done [#allocation5], 512
    $region13: #{tpu_custom_call.1} parent=1 // pred_fallthru
      _
    // Predicated region
    $region14: #{tpu_custom_call.1} parent=1 // pred_check
      _
    $region15: #{tpu_custom_call.1} parent=1 // pred_check_branch
      %38 = sbr.rel (0) target = $region17
    $region16: #{tpu_custom_call.1} parent=1 // pred_region
      %39 = dma.done [#allocation8], 2048
    $region17: #{tpu_custom_call.1} parent=1 // pred_fallthru
      _
    %p40 = scmp.eq.s32.totalorder 0, 0
    // Predicated region
    $region18: #{tpu_custom_call.1} parent=1 // pred_check
      %p41 = pneg %p40
    $region19: #{tpu_custom_call.1} parent=1 // pred_check_branch
      %43 = sbr.rel (%p41) target = $region21
    $region20: #{tpu_custom_call.1} parent=1 // pred_region
      %vm44 = vcmask 517120
      %45 = vst.msk [vmem:[#allocation2] sm:$0x3] %vm44, 0.0
      %46 = vst.msk [vmem:[#allocation3] sm:$0x3] %vm44, 0.0
    $region21: #{tpu_custom_call.1} parent=1 // pred_fallthru
      _
    %v47 = vld [vmem:[#allocation2] sm:$0x3]
    %v48 = vld [vmem:[#allocation3] sm:$0x3]
    %v49 = vld [vmem:[#allocation4] sm:$0xf]
    %v50 = vld [vmem:[#allocation7] sm:$0xff]
    %v51 = vld [vmem:[#allocation7 + $0x8] sm:$0xff]
    %v52 = vld [vmem:[#allocation7 + $0x10] sm:$0xff]
    %v53 = vld [vmem:[#allocation7 + $0x18] sm:$0xff]
    %v54 = vld [vmem:[#allocation7 + $0x20] sm:$0xff]
    %v55 = vld [vmem:[#allocation7 + $0x28] sm:$0xff]
    %v56 = vld [vmem:[#allocation7 + $0x30] sm:$0xff]
    %v57 = vld [vmem:[#allocation7 + $0x38] sm:$0xff]
    %v58 = vld [vmem:[#allocation7 + $0x40] sm:$0xff]
    %v59 = vld [vmem:[#allocation7 + $0x48] sm:$0xff]
    %v60 = vld [vmem:[#allocation7 + $0x50] sm:$0xff]
    %v61 = vld [vmem:[#allocation7 + $0x58] sm:$0xff]
    %v62 = vld [vmem:[#allocation7 + $0x60] sm:$0xff]
    %v63 = vld [vmem:[#allocation7 + $0x68] sm:$0xff]
    %v64 = vld [vmem:[#allocation7 + $0x70] sm:$0xff]
    %v65 = vld [vmem:[#allocation7 + $0x78] sm:$0xff]
    %vm66 = vcmask 523264
    %v68 = vsel %vm66, %v47, 0
    %70 = vmatprep.subr.mxu0 %v51
    %71 = vmatpush1.msra.mxu0 %v50
    %72 = vmatprep.subr.mxu0 %v53
    %73 = vmatpush1.msra.mxu0 %v52
    %74 = vmatprep.subr.mxu0 %v55
    %75 = vmatpush1.msra.mxu0 %v54
    %76 = vmatprep.subr.mxu0 %v57
    %77 = vmatpush1.msra.mxu0 %v56
    %78 = vmatprep.subr.mxu0 %v59
    %79 = vmatpush1.msra.mxu0 %v58
    %80 = vmatprep.subr.mxu0 %v61
    %81 = vmatpush1.msra.mxu0 %v60
    %82 = vmatprep.subr.mxu0 %v63
    %83 = vmatpush1.msra.mxu0 %v62
    %84 = vmatprep.subr.mxu0 %v65
    %85 = vmatpush1.msra.mxu0 %v64
    %86 = vmatprep.subr.mxu0 0.0
    %87 = vmatpush1.msra.mxu0 0.0
    %88 = vmatprep.subr.mxu0 0.0
    %89 = vmatpush1.msra.mxu0 0.0
    %90 = vmatprep.subr.mxu0 0.0
    %91 = vmatpush1.msra.mxu0 0.0
    %92 = vmatprep.subr.mxu0 0.0
    %93 = vmatpush1.msra.mxu0 0.0
    %94 = vmatprep.subr.mxu0 0.0
    %95 = vmatpush1.msra.mxu0 0.0
    %96 = vmatprep.subr.mxu0 0.0
    %97 = vmatpush1.msra.mxu0 0.0
    %98 = vmatprep.subr.mxu0 0.0
    %99 = vmatpush1.msra.mxu0 0.0
    %100 = vmatprep.subr.mxu0 0.0
    %101 = vmatpush1.msra.mxu0 0.0
    %102 = vmatprep.subr.mxu0 0.0
    %103 = vmatpush1.msra.mxu0 0.0
    %104 = vmatprep.subr.mxu0 0.0
    %105 = vmatpush1.msra.mxu0 0.0
    %106 = vmatprep.subr.mxu0 0.0
    %107 = vmatpush1.msra.mxu0 0.0
    %108 = vmatprep.subr.mxu0 0.0
    %109 = vmatpush1.msra.mxu0 0.0
    %110 = vmatprep.subr.mxu0 0.0
    %111 = vmatpush1.msra.mxu0 0.0
    %112 = vmatprep.subr.mxu0 0.0
    %113 = vmatpush1.msra.mxu0 0.0
    %114 = vmatprep.subr.mxu0 0.0
    %115 = vmatpush1.msra.mxu0 0.0
    %116 = vmatprep.subr.mxu0 0.0
    %117 = vmatpush1.msra.mxu0 0.0
    %118 = vmatprep.subr.mxu0 0.0
    %119 = vmatpush1.msra.mxu0 0.0
    %120 = vmatprep.subr.mxu0 0.0
    %121 = vmatpush1.msra.mxu0 0.0
    %122 = vmatprep.subr.mxu0 0.0
    %123 = vmatpush1.msra.mxu0 0.0
    %124 = vmatprep.subr.mxu0 0.0
    %125 = vmatpush1.msra.mxu0 0.0
    %126 = vmatprep.subr.mxu0 0.0
    %127 = vmatpush1.msra.mxu0 0.0
    %128 = vmatprep.subr.mxu0 0.0
    %129 = vmatpush1.msra.mxu0 0.0
    %130 = vmatprep.subr.mxu0 0.0
    %131 = vmatpush1.msra.mxu0 0.0
    %132 = vmatprep.subr.mxu0 0.0
    %133 = vmatpush1.msra.mxu0 0.0
    %134 = vmatprep.mubr.f32.mxu0 0.0
    %135 = vmatmul.mubr.f32.gmra.mrb[0].mxu0 %v68
    %v136 = vpop.f32.mrb[0].mxu0
    %v137 = vadd.f32 0.0, %v136
    %v138 = vpop.f32.mrb[0].mxu0
    %v139 = vadd.f32 0.0, %v138
    %140 = vdwg.mxu0
    %v143 = vcombine.low %v137, %v139
    %v145 = vunpack.c.l.s4 1983009808
    %v146 = vunpack.c.0.s8 %v145
    %v147 = vlaneseq
    %v148 = vshrl.u32 %v147, 7
    %v149 = vsub.s32 %v146, %v148
    %v150 = vrot.slane %v143, %v149
    %v152 = vadd.f32 %v49, %v150
    %v153 = vtanh.pop %v152
    %v154 = vmul.f32 %v153, 0.5
    %v155 = vadd.f32 %v154, 0.5
    %v157 = vrot.slane %v153, 2
    %v159 = vmul.f32 %v157, 0.5
    %v160 = vadd.f32 %v159, 0.5
    %v163 = vunpack.c.l.s4 1983009808
    %v164 = vunpack.c.0.s8 %v163
    %v165 = vlaneseq
    %v166 = vshrl.u32 %v165, 7
    %v167 = vsub.s32 %v164, %v166
    %v168 = vrot.slane %v48, %v167
    %169 = vrot.lane.b32.xlu0 %v168, 64
    %v170 = vpop.permute.xlu0 %169
    %v172 = vmul.f32 %v155, %v170
    %173 = vrot.lane.b32.xlu0 %v153, 64
    %v174 = vpop.permute.xlu0 %173
    %v175 = vrot.slane %v174, 2
    %v177 = vmul.f32 %v155, %v175
    %179 = vrot.lane.b32.xlu0 %v177, 64
    %v180 = vpop.permute.xlu0 %179
    %v182 = vadd.f32 %v172, %v180
    %v183 = vtanh.pop %v182
    %185 = vrot.lane.b32.xlu0 %v183, 64
    %v186 = vpop.permute.xlu0 %185
    %v188 = vmul.f32 %v160, %v186
    %s189 = scalar_lea.vmem [#allocation4], 4
    %v190 = vld [vmem:[%s189] sm:$0xf]
    %v192 = vsel %vm66, %v188, 0
    %194 = vmatprep.subr.mxu0 %v51
    %195 = vmatpush1.msra.mxu0 %v50
    %196 = vmatprep.subr.mxu0 %v53
    %197 = vmatpush1.msra.mxu0 %v52
    %198 = vmatprep.subr.mxu0 %v55
    %199 = vmatpush1.msra.mxu0 %v54
    %200 = vmatprep.subr.mxu0 %v57
    %201 = vmatpush1.msra.mxu0 %v56
    %202 = vmatprep.subr.mxu0 %v59
    %203 = vmatpush1.msra.mxu0 %v58
    %204 = vmatprep.subr.mxu0 %v61
    %205 = vmatpush1.msra.mxu0 %v60
    %206 = vmatprep.subr.mxu0 %v63
    %207 = vmatpush1.msra.mxu0 %v62
    %208 = vmatprep.subr.mxu0 %v65
    %209 = vmatpush1.msra.mxu0 %v64
    %210 = vmatprep.subr.mxu0 0.0
    %211 = vmatpush1.msra.mxu0 0.0
    %212 = vmatprep.subr.mxu0 0.0
    %213 = vmatpush1.msra.mxu0 0.0
    %214 = vmatprep.subr.mxu0 0.0
    %215 = vmatpush1.msra.mxu0 0.0
    %216 = vmatprep.subr.mxu0 0.0
    %217 = vmatpush1.msra.mxu0 0.0
    %218 = vmatprep.subr.mxu0 0.0
    %219 = vmatpush1.msra.mxu0 0.0
    %220 = vmatprep.subr.mxu0 0.0
    %221 = vmatpush1.msra.mxu0 0.0
    %222 = vmatprep.subr.mxu0 0.0
    %223 = vmatpush1.msra.mxu0 0.0
    %224 = vmatprep.subr.mxu0 0.0
    %225 = vmatpush1.msra.mxu0 0.0
    %226 = vmatprep.subr.mxu0 0.0
    %227 = vmatpush1.msra.mxu0 0.0
    %228 = vmatprep.subr.mxu0 0.0
    %229 = vmatpush1.msra.mxu0 0.0
    %230 = vmatprep.subr.mxu0 0.0
    %231 = vmatpush1.msra.mxu0 0.0
    %232 = vmatprep.subr.mxu0 0.0
    %233 = vmatpush1.msra.mxu0 0.0
    %234 = vmatprep.subr.mxu0 0.0
    %235 = vmatpush1.msra.mxu0 0.0
    %236 = vmatprep.subr.mxu0 0.0
    %237 = vmatpush1.msra.mxu0 0.0
    %238 = vmatprep.subr.mxu0 0.0
    %239 = vmatpush1.msra.mxu0 0.0
    %240 = vmatprep.subr.mxu0 0.0
    %241 = vmatpush1.msra.mxu0 0.0
    %242 = vmatprep.subr.mxu0 0.0
    %243 = vmatpush1.msra.mxu0 0.0
    %244 = vmatprep.subr.mxu0 0.0
    %245 = vmatpush1.msra.mxu0 0.0
    %246 = vmatprep.subr.mxu0 0.0
    %247 = vmatpush1.msra.mxu0 0.0
    %248 = vmatprep.subr.mxu0 0.0
    %249 = vmatpush1.msra.mxu0 0.0
    %250 = vmatprep.subr.mxu0 0.0
    %251 = vmatpush1.msra.mxu0 0.0
    %252 = vmatprep.subr.mxu0 0.0
    %253 = vmatpush1.msra.mxu0 0.0
    %254 = vmatprep.subr.mxu0 0.0
    %255 = vmatpush1.msra.mxu0 0.0
    %256 = vmatprep.subr.mxu0 0.0
    %257 = vmatpush1.msra.mxu0 0.0
    %258 = vmatprep.mubr.f32.mxu0 0.0
    %259 = vmatmul.mubr.f32.gmra.mrb[0].mxu0 %v192
    %v260 = vpop.f32.mrb[0].mxu0
    %v261 = vadd.f32 0.0, %v260
    %v262 = vpop.f32.mrb[0].mxu0
    %v263 = vadd.f32 0.0, %v262
    %264 = vdwg.mxu0
    %v267 = vcombine.low %v261, %v263
    %v269 = vunpack.c.l.s4 1983009808
    %v270 = vunpack.c.0.s8 %v269
    %v271 = vlaneseq
    %v272 = vshrl.u32 %v271, 7
    %v273 = vsub.s32 %v270, %v272
    %v274 = vrot.slane %v267, %v273
    %v276 = vadd.f32 %v190, %v274
    %v277 = vtanh.pop %v276
    %v278 = vmul.f32 %v277, 0.5
    %v279 = vadd.f32 %v278, 0.5
    %v281 = vrot.slane %v277, 2
    %v283 = vmul.f32 %v281, 0.5
    %v284 = vadd.f32 %v283, 0.5
    %v285 = vmul.f32 %v279, %v182
    %286 = vrot.lane.b32.xlu0 %v277, 64
    %v287 = vpop.permute.xlu0 %286
    %v288 = vrot.slane %v287, 2
    %v290 = vmul.f32 %v279, %v288
    %292 = vrot.lane.b32.xlu0 %v290, 64
    %v293 = vpop.permute.xlu0 %292
    %v295 = vadd.f32 %v285, %v293
    %v296 = vtanh.pop %v295
    %298 = vrot.lane.b32.xlu0 %v296, 64
    %v299 = vpop.permute.xlu0 %298
    %v301 = vmul.f32 %v284, %v299
    %s302 = scalar_lea.vmem [#allocation4], 8
    %v303 = vld [vmem:[%s302] sm:$0xf]
    %v305 = vsel %vm66, %v301, 0
    %307 = vmatprep.subr.mxu0 %v51
    %308 = vmatpush1.msra.mxu0 %v50
    %309 = vmatprep.subr.mxu0 %v53
    %310 = vmatpush1.msra.mxu0 %v52
    %311 = vmatprep.subr.mxu0 %v55
    %312 = vmatpush1.msra.mxu0 %v54
    %313 = vmatprep.subr.mxu0 %v57
    %314 = vmatpush1.msra.mxu0 %v56
    %315 = vmatprep.subr.mxu0 %v59
    %316 = vmatpush1.msra.mxu0 %v58
    %317 = vmatprep.subr.mxu0 %v61
    %318 = vmatpush1.msra.mxu0 %v60
    %319 = vmatprep.subr.mxu0 %v63
    %320 = vmatpush1.msra.mxu0 %v62
    %321 = vmatprep.subr.mxu0 %v65
    %322 = vmatpush1.msra.mxu0 %v64
    %323 = vmatprep.subr.mxu0 0.0
    %324 = vmatpush1.msra.mxu0 0.0
    %325 = vmatprep.subr.mxu0 0.0
    %326 = vmatpush1.msra.mxu0 0.0
    %327 = vmatprep.subr.mxu0 0.0
    %328 = vmatpush1.msra.mxu0 0.0
    %329 = vmatprep.subr.mxu0 0.0
    %330 = vmatpush1.msra.mxu0 0.0
    %331 = vmatprep.subr.mxu0 0.0
    %332 = vmatpush1.msra.mxu0 0.0
    %333 = vmatprep.subr.mxu0 0.0
    %334 = vmatpush1.msra.mxu0 0.0
    %335 = vmatprep.subr.mxu0 0.0
    %336 = vmatpush1.msra.mxu0 0.0
    %337 = vmatprep.subr.mxu0 0.0
    %338 = vmatpush1.msra.mxu0 0.0
    %339 = vmatprep.subr.mxu0 0.0
    %340 = vmatpush1.msra.mxu0 0.0
    %341 = vmatprep.subr.mxu0 0.0
    %342 = vmatpush1.msra.mxu0 0.0
    %343 = vmatprep.subr.mxu0 0.0
    %344 = vmatpush1.msra.mxu0 0.0
    %345 = vmatprep.subr.mxu0 0.0
    %346 = vmatpush1.msra.mxu0 0.0
    %347 = vmatprep.subr.mxu0 0.0
    %348 = vmatpush1.msra.mxu0 0.0
    %349 = vmatprep.subr.mxu0 0.0
    %350 = vmatpush1.msra.mxu0 0.0
    %351 = vmatprep.subr.mxu0 0.0
    %352 = vmatpush1.msra.mxu0 0.0
    %353 = vmatprep.subr.mxu0 0.0
    %354 = vmatpush1.msra.mxu0 0.0
    %355 = vmatprep.subr.mxu0 0.0
    %356 = vmatpush1.msra.mxu0 0.0
    %357 = vmatprep.subr.mxu0 0.0
    %358 = vmatpush1.msra.mxu0 0.0
    %359 = vmatprep.subr.mxu0 0.0
    %360 = vmatpush1.msra.mxu0 0.0
    %361 = vmatprep.subr.mxu0 0.0
    %362 = vmatpush1.msra.mxu0 0.0
    %363 = vmatprep.subr.mxu0 0.0
    %364 = vmatpush1.msra.mxu0 0.0
    %365 = vmatprep.subr.mxu0 0.0
    %366 = vmatpush1.msra.mxu0 0.0
    %367 = vmatprep.subr.mxu0 0.0
    %368 = vmatpush1.msra.mxu0 0.0
    %369 = vmatprep.subr.mxu0 0.0
    %370 = vmatpush1.msra.mxu0 0.0
    %371 = vmatprep.mubr.f32.mxu0 0.0
    %372 = vmatmul.mubr.f32.gmra.mrb[0].mxu0 %v305
    %v373 = vpop.f32.mrb[0].mxu0
    %v374 = vadd.f32 0.0, %v373
    %v375 = vpop.f32.mrb[0].mxu0
    %v376 = vadd.f32 0.0, %v375
    %377 = vdwg.mxu0
    %v380 = vcombine.low %v374, %v376
    %v382 = vunpack.c.l.s4 1983009808
    %v383 = vunpack.c.0.s8 %v382
    %v384 = vlaneseq
    %v385 = vshrl.u32 %v384, 7
    %v386 = vsub.s32 %v383, %v385
    %v387 = vrot.slane %v380, %v386
    %v389 = vadd.f32 %v303, %v387
    %v390 = vtanh.pop %v389
    %v391 = vmul.f32 %v390, 0.5
    %v392 = vadd.f32 %v391, 0.5
    %v394 = vrot.slane %v390, 2
    %v396 = vmul.f32 %v394, 0.5
    %v397 = vadd.f32 %v396, 0.5
    %v398 = vmul.f32 %v392, %v295
    %399 = vrot.lane.b32.xlu0 %v390, 64
    %v400 = vpop.permute.xlu0 %399
    %v401 = vrot.slane %v400, 2
    %v403 = vmul.f32 %v392, %v401
    %405 = vrot.lane.b32.xlu0 %v403, 64
    %v406 = vpop.permute.xlu0 %405
    %v408 = vadd.f32 %v398, %v406
    %v409 = vtanh.pop %v408
    %411 = vrot.lane.b32.xlu0 %v409, 64
    %v412 = vpop.permute.xlu0 %411
    %v414 = vmul.f32 %v397, %v412
    %s415 = scalar_lea.vmem [#allocation4], 12
    %v416 = vld [vmem:[%s415] sm:$0xf]
    %v418 = vsel %vm66, %v414, 0
    %420 = vmatprep.subr.mxu0 %v51
    %421 = vmatpush1.msra.mxu0 %v50
    %422 = vmatprep.subr.mxu0 %v53
    %423 = vmatpush1.msra.mxu0 %v52
    %424 = vmatprep.subr.mxu0 %v55
    %425 = vmatpush1.msra.mxu0 %v54
    %426 = vmatprep.subr.mxu0 %v57
    %427 = vmatpush1.msra.mxu0 %v56
    %428 = vmatprep.subr.mxu0 %v59
    %429 = vmatpush1.msra.mxu0 %v58
    %430 = vmatprep.subr.mxu0 %v61
    %431 = vmatpush1.msra.mxu0 %v60
    %432 = vmatprep.subr.mxu0 %v63
    %433 = vmatpush1.msra.mxu0 %v62
    %434 = vmatprep.subr.mxu0 %v65
    %435 = vmatpush1.msra.mxu0 %v64
    %436 = vmatprep.subr.mxu0 0.0
    %437 = vmatpush1.msra.mxu0 0.0
    %438 = vmatprep.subr.mxu0 0.0
    %439 = vmatpush1.msra.mxu0 0.0
    %440 = vmatprep.subr.mxu0 0.0
    %441 = vmatpush1.msra.mxu0 0.0
    %442 = vmatprep.subr.mxu0 0.0
    %443 = vmatpush1.msra.mxu0 0.0
    %444 = vmatprep.subr.mxu0 0.0
    %445 = vmatpush1.msra.mxu0 0.0
    %446 = vmatprep.subr.mxu0 0.0
    %447 = vmatpush1.msra.mxu0 0.0
    %448 = vmatprep.subr.mxu0 0.0
    %449 = vmatpush1.msra.mxu0 0.0
    %450 = vmatprep.subr.mxu0 0.0
    %451 = vmatpush1.msra.mxu0 0.0
    %452 = vmatprep.subr.mxu0 0.0
    %453 = vmatpush1.msra.mxu0 0.0
    %454 = vmatprep.subr.mxu0 0.0
    %455 = vmatpush1.msra.mxu0 0.0
    %456 = vmatprep.subr.mxu0 0.0
    %457 = vmatpush1.msra.mxu0 0.0
    %458 = vmatprep.subr.mxu0 0.0
    %459 = vmatpush1.msra.mxu0 0.0
    %460 = vmatprep.subr.mxu0 0.0
    %461 = vmatpush1.msra.mxu0 0.0
    %462 = vmatprep.subr.mxu0 0.0
    %463 = vmatpush1.msra.mxu0 0.0
    %464 = vmatprep.subr.mxu0 0.0
    %465 = vmatpush1.msra.mxu0 0.0
    %466 = vmatprep.subr.mxu0 0.0
    %467 = vmatpush1.msra.mxu0 0.0
    %468 = vmatprep.subr.mxu0 0.0
    %469 = vmatpush1.msra.mxu0 0.0
    %470 = vmatprep.subr.mxu0 0.0
    %471 = vmatpush1.msra.mxu0 0.0
    %472 = vmatprep.subr.mxu0 0.0
    %473 = vmatpush1.msra.mxu0 0.0
    %474 = vmatprep.subr.mxu0 0.0
    %475 = vmatpush1.msra.mxu0 0.0
    %476 = vmatprep.subr.mxu0 0.0
    %477 = vmatpush1.msra.mxu0 0.0
    %478 = vmatprep.subr.mxu0 0.0
    %479 = vmatpush1.msra.mxu0 0.0
    %480 = vmatprep.subr.mxu0 0.0
    %481 = vmatpush1.msra.mxu0 0.0
    %482 = vmatprep.subr.mxu0 0.0
    %483 = vmatpush1.msra.mxu0 0.0
    %484 = vmatprep.mubr.f32.mxu0 0.0
    %485 = vmatmul.mubr.f32.gmra.mrb[0].mxu0 %v418
    %v486 = vpop.f32.mrb[0].mxu0
    %v487 = vadd.f32 0.0, %v486
    %v488 = vpop.f32.mrb[0].mxu0
    %v489 = vadd.f32 0.0, %v488
    %490 = vdwg.mxu0
    %v493 = vcombine.low %v487, %v489
    %v495 = vunpack.c.l.s4 1983009808
    %v496 = vunpack.c.0.s8 %v495
    %v497 = vlaneseq
    %v498 = vshrl.u32 %v497, 7
    %v499 = vsub.s32 %v496, %v498
    %v500 = vrot.slane %v493, %v499
    %v502 = vadd.f32 %v416, %v500
    %v503 = vtanh.pop %v502
    %v504 = vmul.f32 %v503, 0.5
    %v505 = vadd.f32 %v504, 0.5
    %v507 = vrot.slane %v503, 2
    %v509 = vmul.f32 %v507, 0.5
    %v510 = vadd.f32 %v509, 0.5
    %v511 = vmul.f32 %v505, %v408
    %512 = vrot.lane.b32.xlu0 %v503, 64
    %v513 = vpop.permute.xlu0 %512
    %v514 = vrot.slane %v513, 2
    %v516 = vmul.f32 %v505, %v514
    %518 = vrot.lane.b32.xlu0 %v516, 64
    %v519 = vpop.permute.xlu0 %518
    %v521 = vadd.f32 %v511, %v519
    %v522 = vtanh.pop %v521
    %524 = vrot.lane.b32.xlu0 %v522, 64
    %v525 = vpop.permute.xlu0 %524
    %v527 = vmul.f32 %v510, %v525
    %s528 = scalar_lea.vmem [#allocation4], 16
    %v529 = vld [vmem:[%s528] sm:$0xf]
    %v531 = vsel %vm66, %v527, 0
    %533 = vmatprep.subr.mxu0 %v51
    %534 = vmatpush1.msra.mxu0 %v50
    %535 = vmatprep.subr.mxu0 %v53
    %536 = vmatpush1.msra.mxu0 %v52
    %537 = vmatprep.subr.mxu0 %v55
    %538 = vmatpush1.msra.mxu0 %v54
    %539 = vmatprep.subr.mxu0 %v57
    %540 = vmatpush1.msra.mxu0 %v56
    %541 = vmatprep.subr.mxu0 %v59
    %542 = vmatpush1.msra.mxu0 %v58
    %543 = vmatprep.subr.mxu0 %v61
    %544 = vmatpush1.msra.mxu0 %v60
    %545 = vmatprep.subr.mxu0 %v63
    %546 = vmatpush1.msra.mxu0 %v62
    %547 = vmatprep.subr.mxu0 %v65
    %548 = vmatpush1.msra.mxu0 %v64
    %549 = vmatprep.subr.mxu0 0.0
    %550 = vmatpush1.msra.mxu0 0.0
    %551 = vmatprep.subr.mxu0 0.0
    %552 = vmatpush1.msra.mxu0 0.0
    %553 = vmatprep.subr.mxu0 0.0
    %554 = vmatpush1.msra.mxu0 0.0
    %555 = vmatprep.subr.mxu0 0.0
    %556 = vmatpush1.msra.mxu0 0.0
    %557 = vmatprep.subr.mxu0 0.0
    %558 = vmatpush1.msra.mxu0 0.0
    %559 = vmatprep.subr.mxu0 0.0
    %560 = vmatpush1.msra.mxu0 0.0
    %561 = vmatprep.subr.mxu0 0.0
    %562 = vmatpush1.msra.mxu0 0.0
    %563 = vmatprep.subr.mxu0 0.0
    %564 = vmatpush1.msra.mxu0 0.0
    %565 = vmatprep.subr.mxu0 0.0
    %566 = vmatpush1.msra.mxu0 0.0
    %567 = vmatprep.subr.mxu0 0.0
    %568 = vmatpush1.msra.mxu0 0.0
    %569 = vmatprep.subr.mxu0 0.0
    %570 = vmatpush1.msra.mxu0 0.0
    %571 = vmatprep.subr.mxu0 0.0
    %572 = vmatpush1.msra.mxu0 0.0
    %573 = vmatprep.subr.mxu0 0.0
    %574 = vmatpush1.msra.mxu0 0.0
    %575 = vmatprep.subr.mxu0 0.0
    %576 = vmatpush1.msra.mxu0 0.0
    %577 = vmatprep.subr.mxu0 0.0
    %578 = vmatpush1.msra.mxu0 0.0
    %579 = vmatprep.subr.mxu0 0.0
    %580 = vmatpush1.msra.mxu0 0.0
    %581 = vmatprep.subr.mxu0 0.0
    %582 = vmatpush1.msra.mxu0 0.0
    %583 = vmatprep.subr.mxu0 0.0
    %584 = vmatpush1.msra.mxu0 0.0
    %585 = vmatprep.subr.mxu0 0.0
    %586 = vmatpush1.msra.mxu0 0.0
    %587 = vmatprep.subr.mxu0 0.0
    %588 = vmatpush1.msra.mxu0 0.0
    %589 = vmatprep.subr.mxu0 0.0
    %590 = vmatpush1.msra.mxu0 0.0
    %591 = vmatprep.subr.mxu0 0.0
    %592 = vmatpush1.msra.mxu0 0.0
    %593 = vmatprep.subr.mxu0 0.0
    %594 = vmatpush1.msra.mxu0 0.0
    %595 = vmatprep.subr.mxu0 0.0
    %596 = vmatpush1.msra.mxu0 0.0
    %597 = vmatprep.mubr.f32.mxu0 0.0
    %598 = vmatmul.mubr.f32.gmra.mrb[0].mxu0 %v531
    %v599 = vpop.f32.mrb[0].mxu0
    %v600 = vadd.f32 0.0, %v599
    %v601 = vpop.f32.mrb[0].mxu0
    %v602 = vadd.f32 0.0, %v601
    %603 = vdwg.mxu0
    %v606 = vcombine.low %v600, %v602
    %v608 = vunpack.c.l.s4 1983009808
    %v609 = vunpack.c.0.s8 %v608
    %v610 = vlaneseq
    %v611 = vshrl.u32 %v610, 7
    %v612 = vsub.s32 %v609, %v611
    %v613 = vrot.slane %v606, %v612
    %v615 = vadd.f32 %v529, %v613
    %v616 = vtanh.pop %v615
    %v617 = vmul.f32 %v616, 0.5
    %v618 = vadd.f32 %v617, 0.5
    %v620 = vrot.slane %v616, 2
    %v622 = vmul.f32 %v620, 0.5
    %v623 = vadd.f32 %v622, 0.5
    %v624 = vmul.f32 %v618, %v521
    %625 = vrot.lane.b32.xlu0 %v616, 64
    %v626 = vpop.permute.xlu0 %625
    %v627 = vrot.slane %v626, 2
    %v629 = vmul.f32 %v618, %v627
    %631 = vrot.lane.b32.xlu0 %v629, 64
    %v632 = vpop.permute.xlu0 %631
    %v634 = vadd.f32 %v624, %v632
    %v635 = vtanh.pop %v634
    %637 = vrot.lane.b32.xlu0 %v635, 64
    %v638 = vpop.permute.xlu0 %637
    %v640 = vmul.f32 %v623, %v638
    %s641 = scalar_lea.vmem [#allocation4], 20
    %v642 = vld [vmem:[%s641] sm:$0xf]
    %v644 = vsel %vm66, %v640, 0
    %646 = vmatprep.subr.mxu0 %v51
    %647 = vmatpush1.msra.mxu0 %v50
    %648 = vmatprep.subr.mxu0 %v53
    %649 = vmatpush1.msra.mxu0 %v52
    %650 = vmatprep.subr.mxu0 %v55
    %651 = vmatpush1.msra.mxu0 %v54
    %652 = vmatprep.subr.mxu0 %v57
    %653 = vmatpush1.msra.mxu0 %v56
    %654 = vmatprep.subr.mxu0 %v59
    %655 = vmatpush1.msra.mxu0 %v58
    %656 = vmatprep.subr.mxu0 %v61
    %657 = vmatpush1.msra.mxu0 %v60
    %658 = vmatprep.subr.mxu0 %v63
    %659 = vmatpush1.msra.mxu0 %v62
    %660 = vmatprep.subr.mxu0 %v65
    %661 = vmatpush1.msra.mxu0 %v64
    %662 = vmatprep.subr.mxu0 0.0
    %663 = vmatpush1.msra.mxu0 0.0
    %664 = vmatprep.subr.mxu0 0.0
    %665 = vmatpush1.msra.mxu0 0.0
    %666 = vmatprep.subr.mxu0 0.0
    %667 = vmatpush1.msra.mxu0 0.0
    %668 = vmatprep.subr.mxu0 0.0
    %669 = vmatpush1.msra.mxu0 0.0
    %670 = vmatprep.subr.mxu0 0.0
    %671 = vmatpush1.msra.mxu0 0.0
    %672 = vmatprep.subr.mxu0 0.0
    %673 = vmatpush1.msra.mxu0 0.0
    %674 = vmatprep.subr.mxu0 0.0
    %675 = vmatpush1.msra.mxu0 0.0
    %676 = vmatprep.subr.mxu0 0.0
    %677 = vmatpush1.msra.mxu0 0.0
    %678 = vmatprep.subr.mxu0 0.0
    %679 = vmatpush1.msra.mxu0 0.0
    %680 = vmatprep.subr.mxu0 0.0
    %681 = vmatpush1.msra.mxu0 0.0
    %682 = vmatprep.subr.mxu0 0.0
    %683 = vmatpush1.msra.mxu0 0.0
    %684 = vmatprep.subr.mxu0 0.0
    %685 = vmatpush1.msra.mxu0 0.0
    %686 = vmatprep.subr.mxu0 0.0
    %687 = vmatpush1.msra.mxu0 0.0
    %688 = vmatprep.subr.mxu0 0.0
    %689 = vmatpush1.msra.mxu0 0.0
    %690 = vmatprep.subr.mxu0 0.0
    %691 = vmatpush1.msra.mxu0 0.0
    %692 = vmatprep.subr.mxu0 0.0
    %693 = vmatpush1.msra.mxu0 0.0
    %694 = vmatprep.subr.mxu0 0.0
    %695 = vmatpush1.msra.mxu0 0.0
    %696 = vmatprep.subr.mxu0 0.0
    %697 = vmatpush1.msra.mxu0 0.0
    %698 = vmatprep.subr.mxu0 0.0
    %699 = vmatpush1.msra.mxu0 0.0
    %700 = vmatprep.subr.mxu0 0.0
    %701 = vmatpush1.msra.mxu0 0.0
    %702 = vmatprep.subr.mxu0 0.0
    %703 = vmatpush1.msra.mxu0 0.0
    %704 = vmatprep.subr.mxu0 0.0
    %705 = vmatpush1.msra.mxu0 0.0
    %706 = vmatprep.subr.mxu0 0.0
    %707 = vmatpush1.msra.mxu0 0.0
    %708 = vmatprep.subr.mxu0 0.0
    %709 = vmatpush1.msra.mxu0 0.0
    %710 = vmatprep.mubr.f32.mxu0 0.0
    %711 = vmatmul.mubr.f32.gmra.mrb[0].mxu0 %v644
    %v712 = vpop.f32.mrb[0].mxu0
    %v713 = vadd.f32 0.0, %v712
    %v714 = vpop.f32.mrb[0].mxu0
    %v715 = vadd.f32 0.0, %v714
    %716 = vdwg.mxu0
    %v719 = vcombine.low %v713, %v715
    %v721 = vunpack.c.l.s4 1983009808
    %v722 = vunpack.c.0.s8 %v721
    %v723 = vlaneseq
    %v724 = vshrl.u32 %v723, 7
    %v725 = vsub.s32 %v722, %v724
    %v726 = vrot.slane %v719, %v725
    %v728 = vadd.f32 %v642, %v726
    %v729 = vtanh.pop %v728
    %v730 = vmul.f32 %v729, 0.5
    %v731 = vadd.f32 %v730, 0.5
    %v733 = vrot.slane %v729, 2
    %v735 = vmul.f32 %v733, 0.5
    %v736 = vadd.f32 %v735, 0.5
    %v737 = vmul.f32 %v731, %v634
    %738 = vrot.lane.b32.xlu0 %v729, 64
    %v739 = vpop.permute.xlu0 %738
    %v740 = vrot.slane %v739, 2
    %v742 = vmul.f32 %v731, %v740
    %744 = vrot.lane.b32.xlu0 %v742, 64
    %v745 = vpop.permute.xlu0 %744
    %v747 = vadd.f32 %v737, %v745
    %v748 = vtanh.pop %v747
    %750 = vrot.lane.b32.xlu0 %v748, 64
    %v751 = vpop.permute.xlu0 %750
    %v753 = vmul.f32 %v736, %v751
    %s754 = scalar_lea.vmem [#allocation4], 24
    %v755 = vld [vmem:[%s754] sm:$0xf]
    %v757 = vsel %vm66, %v753, 0
    %759 = vmatprep.subr.mxu0 %v51
    %760 = vmatpush1.msra.mxu0 %v50
    %761 = vmatprep.subr.mxu0 %v53
    %762 = vmatpush1.msra.mxu0 %v52
    %763 = vmatprep.subr.mxu0 %v55
    %764 = vmatpush1.msra.mxu0 %v54
    %765 = vmatprep.subr.mxu0 %v57
    %766 = vmatpush1.msra.mxu0 %v56
    %767 = vmatprep.subr.mxu0 %v59
    %768 = vmatpush1.msra.mxu0 %v58
    %769 = vmatprep.subr.mxu0 %v61
    %770 = vmatpush1.msra.mxu0 %v60
    %771 = vmatprep.subr.mxu0 %v63
    %772 = vmatpush1.msra.mxu0 %v62
    %773 = vmatprep.subr.mxu0 %v65
    %774 = vmatpush1.msra.mxu0 %v64
    %775 = vmatprep.subr.mxu0 0.0
    %776 = vmatpush1.msra.mxu0 0.0
    %777 = vmatprep.subr.mxu0 0.0
    %778 = vmatpush1.msra.mxu0 0.0
    %779 = vmatprep.subr.mxu0 0.0
    %780 = vmatpush1.msra.mxu0 0.0
    %781 = vmatprep.subr.mxu0 0.0
    %782 = vmatpush1.msra.mxu0 0.0
    %783 = vmatprep.subr.mxu0 0.0
    %784 = vmatpush1.msra.mxu0 0.0
    %785 = vmatprep.subr.mxu0 0.0
    %786 = vmatpush1.msra.mxu0 0.0
    %787 = vmatprep.subr.mxu0 0.0
    %788 = vmatpush1.msra.mxu0 0.0
    %789 = vmatprep.subr.mxu0 0.0
    %790 = vmatpush1.msra.mxu0 0.0
    %791 = vmatprep.subr.mxu0 0.0
    %792 = vmatpush1.msra.mxu0 0.0
    %793 = vmatprep.subr.mxu0 0.0
    %794 = vmatpush1.msra.mxu0 0.0
    %795 = vmatprep.subr.mxu0 0.0
    %796 = vmatpush1.msra.mxu0 0.0
    %797 = vmatprep.subr.mxu0 0.0
    %798 = vmatpush1.msra.mxu0 0.0
    %799 = vmatprep.subr.mxu0 0.0
    %800 = vmatpush1.msra.mxu0 0.0
    %801 = vmatprep.subr.mxu0 0.0
    %802 = vmatpush1.msra.mxu0 0.0
    %803 = vmatprep.subr.mxu0 0.0
    %804 = vmatpush1.msra.mxu0 0.0
    %805 = vmatprep.subr.mxu0 0.0
    %806 = vmatpush1.msra.mxu0 0.0
    %807 = vmatprep.subr.mxu0 0.0
    %808 = vmatpush1.msra.mxu0 0.0
    %809 = vmatprep.subr.mxu0 0.0
    %810 = vmatpush1.msra.mxu0 0.0
    %811 = vmatprep.subr.mxu0 0.0
    %812 = vmatpush1.msra.mxu0 0.0
    %813 = vmatprep.subr.mxu0 0.0
    %814 = vmatpush1.msra.mxu0 0.0
    %815 = vmatprep.subr.mxu0 0.0
    %816 = vmatpush1.msra.mxu0 0.0
    %817 = vmatprep.subr.mxu0 0.0
    %818 = vmatpush1.msra.mxu0 0.0
    %819 = vmatprep.subr.mxu0 0.0
    %820 = vmatpush1.msra.mxu0 0.0
    %821 = vmatprep.subr.mxu0 0.0
    %822 = vmatpush1.msra.mxu0 0.0
    %823 = vmatprep.mubr.f32.mxu0 0.0
    %824 = vmatmul.mubr.f32.gmra.mrb[0].mxu0 %v757
    %v825 = vpop.f32.mrb[0].mxu0
    %v826 = vadd.f32 0.0, %v825
    %v827 = vpop.f32.mrb[0].mxu0
    %v828 = vadd.f32 0.0, %v827
    %829 = vdwg.mxu0
    %v832 = vcombine.low %v826, %v828
    %v834 = vunpack.c.l.s4 1983009808
    %v835 = vunpack.c.0.s8 %v834
    %v836 = vlaneseq
    %v837 = vshrl.u32 %v836, 7
    %v838 = vsub.s32 %v835, %v837
    %v839 = vrot.slane %v832, %v838
    %v841 = vadd.f32 %v755, %v839
    %v842 = vtanh.pop %v841
    %v843 = vmul.f32 %v842, 0.5
    %v844 = vadd.f32 %v843, 0.5
    %v846 = vrot.slane %v842, 2
    %v848 = vmul.f32 %v846, 0.5
    %v849 = vadd.f32 %v848, 0.5
    %v850 = vmul.f32 %v844, %v747
    %851 = vrot.lane.b32.xlu0 %v842, 64
    %v852 = vpop.permute.xlu0 %851
    %v853 = vrot.slane %v852, 2
    %v855 = vmul.f32 %v844, %v853
    %857 = vrot.lane.b32.xlu0 %v855, 64
    %v858 = vpop.permute.xlu0 %857
    %v860 = vadd.f32 %v850, %v858
    %v861 = vtanh.pop %v860
    %863 = vrot.lane.b32.xlu0 %v861, 64
    %v864 = vpop.permute.xlu0 %863
    %v866 = vmul.f32 %v849, %v864
    %s867 = scalar_lea.vmem [#allocation4], 28
    %v868 = vld [vmem:[%s867] sm:$0xf]
    %v870 = vsel %vm66, %v866, 0
    %872 = vmatprep.subr.mxu0 %v51
    %873 = vmatpush1.msra.mxu0 %v50
    %874 = vmatprep.subr.mxu0 %v53
    %875 = vmatpush1.msra.mxu0 %v52
    %876 = vmatprep.subr.mxu0 %v55
    %877 = vmatpush1.msra.mxu0 %v54
    %878 = vmatprep.subr.mxu0 %v57
    %879 = vmatpush1.msra.mxu0 %v56
    %880 = vmatprep.subr.mxu0 %v59
    %881 = vmatpush1.msra.mxu0 %v58
    %882 = vmatprep.subr.mxu0 %v61
    %883 = vmatpush1.msra.mxu0 %v60
    %884 = vmatprep.subr.mxu0 %v63
    %885 = vmatpush1.msra.mxu0 %v62
    %886 = vmatprep.subr.mxu0 %v65
    %887 = vmatpush1.msra.mxu0 %v64
    %888 = vmatprep.subr.mxu0 0.0
    %889 = vmatpush1.msra.mxu0 0.0
    %890 = vmatprep.subr.mxu0 0.0
    %891 = vmatpush1.msra.mxu0 0.0
    %892 = vmatprep.subr.mxu0 0.0
    %893 = vmatpush1.msra.mxu0 0.0
    %894 = vmatprep.subr.mxu0 0.0
    %895 = vmatpush1.msra.mxu0 0.0
    %896 = vmatprep.subr.mxu0 0.0
    %897 = vmatpush1.msra.mxu0 0.0
    %898 = vmatprep.subr.mxu0 0.0
    %899 = vmatpush1.msra.mxu0 0.0
    %900 = vmatprep.subr.mxu0 0.0
    %901 = vmatpush1.msra.mxu0 0.0
    %902 = vmatprep.subr.mxu0 0.0
    %903 = vmatpush1.msra.mxu0 0.0
    %904 = vmatprep.subr.mxu0 0.0
    %905 = vmatpush1.msra.mxu0 0.0
    %906 = vmatprep.subr.mxu0 0.0
    %907 = vmatpush1.msra.mxu0 0.0
    %908 = vmatprep.subr.mxu0 0.0
    %909 = vmatpush1.msra.mxu0 0.0
    %910 = vmatprep.subr.mxu0 0.0
    %911 = vmatpush1.msra.mxu0 0.0
    %912 = vmatprep.subr.mxu0 0.0
    %913 = vmatpush1.msra.mxu0 0.0
    %914 = vmatprep.subr.mxu0 0.0
    %915 = vmatpush1.msra.mxu0 0.0
    %916 = vmatprep.subr.mxu0 0.0
    %917 = vmatpush1.msra.mxu0 0.0
    %918 = vmatprep.subr.mxu0 0.0
    %919 = vmatpush1.msra.mxu0 0.0
    %920 = vmatprep.subr.mxu0 0.0
    %921 = vmatpush1.msra.mxu0 0.0
    %922 = vmatprep.subr.mxu0 0.0
    %923 = vmatpush1.msra.mxu0 0.0
    %924 = vmatprep.subr.mxu0 0.0
    %925 = vmatpush1.msra.mxu0 0.0
    %926 = vmatprep.subr.mxu0 0.0
    %927 = vmatpush1.msra.mxu0 0.0
    %928 = vmatprep.subr.mxu0 0.0
    %929 = vmatpush1.msra.mxu0 0.0
    %930 = vmatprep.subr.mxu0 0.0
    %931 = vmatpush1.msra.mxu0 0.0
    %932 = vmatprep.subr.mxu0 0.0
    %933 = vmatpush1.msra.mxu0 0.0
    %934 = vmatprep.subr.mxu0 0.0
    %935 = vmatpush1.msra.mxu0 0.0
    %936 = vmatprep.mubr.f32.mxu0 0.0
    %937 = vmatmul.mubr.f32.gmra.mrb[0].mxu0 %v870
    %v938 = vpop.f32.mrb[0].mxu0
    %v939 = vadd.f32 0.0, %v938
    %v940 = vpop.f32.mrb[0].mxu0
    %v941 = vadd.f32 0.0, %v940
    %942 = vdwg.mxu0
    %v945 = vcombine.low %v939, %v941
    %v947 = vunpack.c.l.s4 1983009808
    %v948 = vunpack.c.0.s8 %v947
    %v949 = vlaneseq
    %v950 = vshrl.u32 %v949, 7
    %v951 = vsub.s32 %v948, %v950
    %v952 = vrot.slane %v945, %v951
    %v954 = vadd.f32 %v868, %v952
    %v955 = vtanh.pop %v954
    %v956 = vmul.f32 %v955, 0.5
    %v957 = vadd.f32 %v956, 0.5
    %v959 = vrot.slane %v955, 2
    %v961 = vmul.f32 %v959, 0.5
    %v962 = vadd.f32 %v961, 0.5
    %v963 = vmul.f32 %v957, %v860
    %964 = vrot.lane.b32.xlu0 %v955, 64
    %v965 = vpop.permute.xlu0 %964
    %v966 = vrot.slane %v965, 2
    %v968 = vmul.f32 %v957, %v966
    %970 = vrot.lane.b32.xlu0 %v968, 64
    %v971 = vpop.permute.xlu0 %970
    %v973 = vadd.f32 %v963, %v971
    %v974 = vtanh.pop %v973
    %976 = vrot.lane.b32.xlu0 %v974, 64
    %v977 = vpop.permute.xlu0 %976
    %v979 = vmul.f32 %v962, %v977
    %vm980 = vcmask 517120
    %981 = vst.msk [vmem:[#allocation2] sm:$0x3] %vm980, %v979
    %v984 = vunpack.c.l.s4 1983009808
    %v985 = vunpack.c.0.s8 %v984
    %v986 = vlaneseq
    %v987 = vshrl.u32 %v986, 7
    %v988 = vsub.s32 %v985, %v987
    %v989 = vrot.slane %v973, %v988
    %990 = vrot.lane.b32.xlu0 %v989, 64
    %v991 = vpop.permute.xlu0 %990
    %993 = vst.msk [vmem:[#allocation3] sm:$0x3] %vm980, %v991
    // Predicated region
    $region22: #{tpu_custom_call.1} parent=1 // pred_check
      %p994 = pneg %p40
    $region23: #{tpu_custom_call.1} parent=1 // pred_check_branch
      %996 = sbr.rel (%p994) target = $region25
    $region24: #{tpu_custom_call.1} parent=1 // pred_region
      %997 = vst.msk [vmem:[#allocation9] sm:$0x3] %vm980, %v979
    $region25: #{tpu_custom_call.1} parent=1 // pred_fallthru
      _
    // Predicated region
    $region26: #{tpu_custom_call.1} parent=1 // pred_check
      _
    $region27: #{tpu_custom_call.1} parent=1 // pred_check_branch
      %999 = sbr.rel (0) target = $region29
    $region28: #{tpu_custom_call.1} parent=1 // pred_region
      %s1001 = ssub.s32 32, 32
      %1002 = vsyncadd [#allocation6], %s1001
      %s1004 = sshll.u32 [#allocation9], 4
      %s1005 = int_to_ptr.vmem [resolvable:$true] %s1004
      %1007 = dma.vmem_to_hbm [thread:$0]  %s1005, 32, %s2, [#allocation6]
    $region29: #{tpu_custom_call.1} parent=1 // pred_fallthru
      _
    // Predicated region
    $region30: #{tpu_custom_call.1} parent=1 // pred_check
      _
    $region31: #{tpu_custom_call.1} parent=1 // pred_check_branch
      %1009 = sbr.rel (0) target = $region33
    $region32: #{tpu_custom_call.1} parent=1 // pred_region
      %1010 = dma.done [#allocation6], 32
    $region33: #{tpu_custom_call.1} parent=1 // pred_fallthru
      _
    %1011 = vsyncpa [#allocation5], 1
    %1012 = vsyncpa [#allocation8], 1
    %1013 = vsyncpa [#allocation6], 1

</llo_original>
